<compile_context>
chip_gen: v6e
topology: v6e:2x2x1
jax: 0.10.0
libtpu: 0.0.40
codegen_flags: <defaults>
</compile_context>

<pallas_src>
import jax
import jax.numpy as jnp
from jax.experimental import pallas as pl
from jax.experimental.pallas import tpu as pltpu


def _chomp_copy_kernel(x_ref, o_ref):
    # Pure tiled copy; Pallas double-buffers the HBM<->VMEM DMAs.
    o_ref[...] = x_ref[...]


def _round_up(x: int, m: int) -> int:
    return ((x + m - 1) // m) * m


def _round_down(x: int, m: int) -> int:
    return (x // m) * m


def _sublane(dtype) -> int:
    # Sublane packing: 8 for 4-byte dtypes, 16 for 2-byte, 32 for 1-byte.
    itemsize = jnp.dtype(dtype).itemsize
    return max(8, 32 // max(itemsize, 1))


def _target_tile_bytes() -> int:
    # ~2 MiB/buffer reaches 85%+ of HBM roofline on v5e/v6e; v7x's 3.2 TB/s
    # HBM needs ~4 MiB to amortize the ~0.35 us per-grid-step overhead.
    try:
        kind = jax.devices()[0].device_kind.lower()
    except Exception:  # pragma: no cover - defensive, e.g. AOT on CPU
        kind = ""
    if ("v7" in kind) or ("tpu7" in kind) or ("7x" in kind):
        return 4 << 20
    return 2 << 20


def _pick_tiles(r: int, l_out: int, itemsize: int, sub: int, target_bytes: int):
    """Adaptive (tile_r, tile_l) hitting ~target_bytes per buffer."""
    r_pad = _round_up(r, sub)
    l_pad = _round_up(l_out, 128)

    # Base lane width; will grow if the row axis is small.
    tile_l = min(l_pad, 1024)

    # Rows that fill the budget at this lane width (multiple of sublane).
    rows_budget = max(sub, _round_down(target_bytes // (tile_l * itemsize), sub))
    tile_r = min(r_pad, rows_budget)

    if tile_r == r_pad:
        # Few rows: grow lanes toward the full kept length to hit the budget.
        lanes_budget = max(128, _round_down(target_bytes // (tile_r * itemsize), 128))
        tile_l = min(l_pad, max(tile_l, lanes_budget))

    return tile_r, tile_l


# Below this many output bytes (or when l_out < 128, which forces masked
# vst.msk stores on every tile), a plain XLA slice is strictly faster.
_MIN_PALLAS_BYTES = 2 << 20


def chomp1d(x: jax.Array, chomp_size: int, *, use_pallas: bool | None = None) -> jax.Array:
    """Pallas equivalent of Chomp1d(chomp_size).forward(x) for x of shape (N, C, L).

    use_pallas: None = auto-dispatch (kernel for large inputs, XLA slice for
    small ones), True = force the Pallas kernel, False = force the slice.
    """
    n, c, l = x.shape
    if chomp_size < 0:
        raise ValueError("chomp_size must be non-negative")

    # Mirror PyTorch x[:, :, :-chomp_size]:
    #   chomp_size == 0 or chomp_size >= L  ->  empty temporal axis.
    l_out = l - chomp_size if 0 < chomp_size < l else 0
    if l_out == 0 or n * c == 0:
        return x[:, :, :0]

    r = n * c
    dtype = x.dtype
    itemsize = jnp.dtype(dtype).itemsize
    out_bytes = r * l_out * itemsize

    if use_pallas is None:
        use_pallas = (out_bytes >= _MIN_PALLAS_BYTES) and (l_out >= 128)
    if not use_pallas:
        # Tiny / fusable case: pallas_call launch + per-step overhead exceeds
        # the copy itself and blocks XLA fusion with neighboring ops.
        return x[:, :, :l_out]

    x2 = x.reshape(r, l)
    sub = _sublane(dtype)
    tile_r, tile_l = _pick_tiles(r, l_out, itemsize, sub, _target_tile_bytes())

    grid_r = pl.cdiv(r, tile_r)
    grid_l = pl.cdiv(l_out, tile_l)

    # Both axes are embarrassingly parallel (no accumulator).  Put the axis
    # that actually has >= 2 blocks first so it gets sharded across the two
    # TensorCores on v7x (harmless on single-TC v5e/v6e).
    if grid_r == 1 and grid_l > 1:
        grid = (grid_l, grid_r)
        in_spec = pl.BlockSpec((tile_r, tile_l), lambda j, i: (i, j))
        out_spec = pl.BlockSpec((tile_r, tile_l), lambda j, i: (i, j))
    else:
        grid = (grid_r, grid_l)
        in_spec = pl.BlockSpec((tile_r, tile_l), lambda i, j: (i, j))
        out_spec = pl.BlockSpec((tile_r, tile_l), lambda i, j: (i, j))

    # VMEM budget: 2 double-buffered input tiles + 2 output tiles + slack,
    # raised in lockstep with the adaptive tile size so larger tiles never
    # trip the scoped default (16 MiB v5e, 32 MiB v6e/v7x).
    tile_bytes = tile_r * tile_l * itemsize
    vmem_limit = max(4 * tile_bytes + (4 << 20), 16 << 20)

    out2 = pl.pallas_call(
        _chomp_copy_kernel,
        out_shape=jax.ShapeDtypeStruct((r, l_out), dtype),
        grid=grid,
        in_specs=[in_spec],
        out_specs=out_spec,
        compiler_params=pltpu.CompilerParams(
            dimension_semantics=("parallel", "parallel"),
            vmem_limit_bytes=vmem_limit,
        ),
        cost_estimate=pl.CostEstimate(
            flops=0,
            transcendentals=0,
            bytes_accessed=2 * out_bytes,
        ),
    )(x2)
    return out2.reshape(n, c, l_out)


if __name__ == "__main__":
    key = jax.random.PRNGKey(0)

    # Small case matching the module's typical (N, C, L) activation shape.
    N, C, L = 2, 4, 16
    chomp_size = 3
    x = jax.random.normal(key, (N, C, L), dtype=jnp.float32)

    # Force the Pallas path so the kernel itself is exercised at small shape.
    out = jax.block_until_ready(chomp1d(x, chomp_size, use_pallas=True))
    ref = x[:, :, :-chomp_size]
    assert out.shape == (N, C, L - chomp_size)
    assert jnp.array_equal(out, ref), "mismatch on small forced-pallas case"

    # Auto-dispatch path (tiny input -> plain slice) must match too.
    out_auto = jax.block_until_ready(chomp1d(x, chomp_size))
    assert jnp.array_equal(out_auto, ref), "mismatch on auto-dispatch case"

    # Multi-column case with few rows: exercises adaptive lane growth and the
    # grid-axis ordering logic (row axis has a single block).
    x2 = jax.random.normal(jax.random.PRNGKey(1), (2, 8, 2080), dtype=jnp.float32)
    out2 = jax.block_until_ready(chomp1d(x2, 32, use_pallas=True))
    assert out2.shape == (2, 8, 2048)
    assert jnp.array_equal(out2, x2[:, :, :-32]), "mismatch on multi-tile case"

    # PyTorch literal-slice semantics for chomp_size == 0 (empty result).
    out3 = chomp1d(x, 0)
    assert out3.shape == (N, C, 0)

    print("KERNEL_OK")
</pallas_src>

<mosaic_0001>
module attributes {stable_mosaic.version = 11 : i64} {
  func.func @_chomp_copy_kernel(%arg0: i32, %arg1: i32, %arg2: memref<8x128xf32, #tpu.memory_space<vmem>>, %arg3: memref<8x128xf32, #tpu.memory_space<vmem>>) attributes {dimension_semantics = [#tpu.dimension_semantics<parallel>, #tpu.dimension_semantics<parallel>], iteration_bounds = array<i64: 1, 1>, scalar_prefetch = 0 : i64, scratch_operands = 0 : i64, tpu.core_type = #tpu.core_type<tc>, window_params = [{transform_indices = @transform_0, window_bounds = array<i64: 8, 128>}, {transform_indices = @transform_1, window_bounds = array<i64: 8, 128>}]} {
    %c0 = arith.constant 0 : index
    %c0_0 = arith.constant 0 : index
    %0 = vector.load %arg2[%c0, %c0_0] : memref<8x128xf32, #tpu.memory_space<vmem>>, vector<8x128xf32>
    %c0_1 = arith.constant 0 : index
    %c0_2 = arith.constant 0 : index
    %1 = vector.load %arg3[%c0_1, %c0_2] : memref<8x128xf32, #tpu.memory_space<vmem>>, vector<8x128xf32>
    tpu.vector_store %arg3[%c0_1, %c0_2], %0 {strides = array<i32>} : memref<8x128xf32, #tpu.memory_space<vmem>>, vector<8x128xf32>,
    return
  }
  func.func @transform_0(%arg0: i32, %arg1: i32) -> (i32, i32) {
    %c0_i32 = arith.constant 0 : i32
    return %arg0, %arg1 : i32, i32
  }
  func.func @transform_1(%arg0: i32, %arg1: i32) -> (i32, i32) {
    %c0_i32 = arith.constant 0 : i32
    return %arg0, %arg1 : i32, i32
  }
}

</mosaic_0001>

<llo_original>
// kernel: tpu_custom_call.1
$region0: #{tpu_custom_call.1}
  #allocation0 [shape = 'u32[]', space=smem, size = 0x4, offset = 0x4, fixed_abs, tag = 'smem constant byte address 0x4 - core index']
  #allocation1 [shape = 'u32[144,128]{1,0:T(1,128)}', space=vmem, size = 0x12000, scoped, tag = 'internal scratch']
  %s0 = inlined_call_operand.hbm [shape: f32[8,16], index: 0, kind: input, shape index: {}]
  %s1 = inlined_call_operand.hbm [shape: f32[8,13], index: 1, kind: output, shape index: {}]
  %s2 = sld [smem:[#allocation0]]
  $region18: #{tpu_custom_call.1} parent=0
    _
  %s4 = ssub.s32 1, %s2
  %s5 = scalar_select 0, %s4, %s2
  $region1: #{tpu_custom_call.1} parent=0
    #allocation2 [shape = 'u8[4096]{0}', space=vmem, size = 0x1000, scoped, tag = 'input window, operand 0, single buffered']
    #allocation3 [shape = 's32[1]{0}', space=sflag, size = 0x4, scoped, tag = 'scoped memory for tpu_custom_call.1']
    #allocation4 [shape = 's32[1]{0}', space=sflag, size = 0x4, scoped, tag = 'scoped memory for tpu_custom_call.1']
    #allocation5 [shape = 'u8[4096]{0}', space=vmem, size = 0x1000, scoped, tag = 'output window, operand 0, single buffered']
    %6 = vsyncpa [#allocation3], 0
    %7 = vsyncpa [#allocation4], 0
    // Predicated region
    $region2: #{tpu_custom_call.1} parent=1 // pred_check
      _
    $region3: #{tpu_custom_call.1} parent=1 // pred_check_branch
      %9 = sbr.rel (0) target = $region5
    $region4: #{tpu_custom_call.1} parent=1 // pred_region
      %s11 = ssub.s32 128, 128
      %12 = vsyncadd [#allocation3], %s11
      %s14 = sshll.u32 [#allocation2], 4
      %s15 = int_to_ptr.vmem [resolvable:$true] %s14
      %17 = dma.hbm_to_vmem [thread:$0]  %s0, 128, %s15, [#allocation3]
    $region5: #{tpu_custom_call.1} parent=1 // pred_fallthru
      _
    // Predicated region
    $region6: #{tpu_custom_call.1} parent=1 // pred_check
      _
    $region7: #{tpu_custom_call.1} parent=1 // pred_check_branch
      %19 = sbr.rel (0) target = $region9
    $region8: #{tpu_custom_call.1} parent=1 // pred_region
      %20 = dma.done [#allocation3], 128
    $region9: #{tpu_custom_call.1} parent=1 // pred_fallthru
      _
    %v21 = vld [vmem:[#allocation2] sm:$0xff]
    %22 = vst [vmem:[#allocation5] sm:$0xff] %v21
    // Predicated region
    $region10: #{tpu_custom_call.1} parent=1 // pred_check
      _
    $region11: #{tpu_custom_call.1} parent=1 // pred_check_branch
      %24 = sbr.rel (0) target = $region13
    $region12: #{tpu_custom_call.1} parent=1 // pred_region
      %s26 = ssub.s32 128, 128
      %27 = vsyncadd [#allocation4], %s26
      %s29 = sshll.u32 [#allocation5], 4
      %s30 = int_to_ptr.vmem [resolvable:$true] %s29
      %32 = dma.vmem_to_hbm [thread:$0]  %s30, 128, %s1, [#allocation4]
    $region13: #{tpu_custom_call.1} parent=1 // pred_fallthru
      _
    // Predicated region
    $region14: #{tpu_custom_call.1} parent=1 // pred_check
      _
    $region15: #{tpu_custom_call.1} parent=1 // pred_check_branch
      %34 = sbr.rel (0) target = $region17
    $region16: #{tpu_custom_call.1} parent=1 // pred_region
      %35 = dma.done [#allocation4], 128
    $region17: #{tpu_custom_call.1} parent=1 // pred_fallthru
      _
    %36 = vsyncpa [#allocation3], 1
    %37 = vsyncpa [#allocation4], 1

</llo_original>
